<compile_context>
chip_gen: v5e
topology: v5e:2x2
jax: 0.10.0
libtpu: 0.0.40
codegen_flags: <defaults>
</compile_context>

<pallas_src>
import jax
import jax.numpy as jnp
from jax.experimental import pallas as pl
from jax.experimental.pallas import tpu as pltpu


def confidence_kernel(x_ref, w1_ref, b1_ref, w2_ref, b2_ref, out_ref):
    # Linear(H -> 256): bf16 x bf16 -> f32 accumulation on the MXU.
    h = jnp.dot(x_ref[...], w1_ref[...], preferred_element_type=jnp.float32)
    h = jnp.maximum(h + b1_ref[...], 0.0)           # + bias, ReLU

    # Dropout(0.1): identity at inference time (no-op).

    # Linear(256 -> 1): N=1 matmul wastes the MXU; do a VPU multiply +
    # lane reduction instead.  w2 is a (1, 256) row (torch nn.Linear layout).
    logit = jnp.sum(h * w2_ref[...], axis=-1, keepdims=True) + b2_ref[...]

    out_ref[...] = jax.nn.sigmoid(logit).astype(out_ref.dtype)


def confidence_head(last_hidden_state, w1, b1, w2, b2):
    """(B, S, H) hidden states -> (B, 1) confidence scores."""
    B, S, H = last_hidden_state.shape
    Hmid = w1.shape[1]  # 256

    # CLS slice in the wrapper: only the (B, H) CLS rows ever reach the kernel.
    cls = last_hidden_state[:, 0, :]

    # Batch tiling: one block for small B, 128-row blocks (multiple of 8
    # sublanes, fills the MXU M dim) for large B; batch axis is parallel.
    TB = B if B <= 128 else 128
    grid = (pl.cdiv(B, TB),)

    itemsize = lambda a: a.size * jnp.dtype(a.dtype).itemsize
    cost = pl.CostEstimate(
        flops=2 * B * H * Hmid + 2 * B * Hmid,
        transcendentals=B,  # sigmoid
        bytes_accessed=(itemsize(cls) + itemsize(w1) + itemsize(b1)
                        + itemsize(w2) + itemsize(b2) + B * 4),
    )

    return pl.pallas_call(
        confidence_kernel,
        out_shape=jax.ShapeDtypeStruct((B, 1), jnp.float32),
        grid_spec=pl.GridSpec(
            grid=grid,
            in_specs=[
                pl.BlockSpec((TB, H), lambda i: (i, 0)),      # CLS activations
                pl.BlockSpec((H, Hmid), lambda i: (0, 0)),    # w1 (in, out), bf16
                pl.BlockSpec((1, Hmid), lambda i: (0, 0)),    # b1
                pl.BlockSpec((1, Hmid), lambda i: (0, 0)),    # w2 row (out=1, in)
                pl.BlockSpec((1, 1), lambda i: (0, 0)),       # b2
            ],
            out_specs=pl.BlockSpec((TB, 1), lambda i: (i, 0)),
        ),
        compiler_params=pltpu.CompilerParams(
            dimension_semantics=("parallel",)),
        cost_estimate=cost,
    )(cls, w1, b1, w2, b2)


def reference_head(last_hidden_state, w1, b1, w2, b2):
    """Pure-JAX reference of the same computation (f32 math)."""
    cls = last_hidden_state[:, 0, :].astype(jnp.float32)
    h = jnp.dot(cls, w1.astype(jnp.float32), precision="highest") + b1
    h = jnp.maximum(h, 0.0)
    logit = jnp.sum(h * w2, axis=-1, keepdims=True) + b2
    return jax.nn.sigmoid(logit)


if __name__ == "__main__":
    # Small, BLIP-consistent shapes: batch=2, seq=8, hidden_size=768.
    B, S, H, HMID = 2, 8, 768, 256

    key = jax.random.PRNGKey(0)
    k_x, k_w1, k_b1, k_w2, k_b2 = jax.random.split(key, 5)

    # Synthetic "outputs.last_hidden_state" (stands in for the fp16 BLIP
    # backbone; bf16 is the TPU-native narrow dtype).
    last_hidden_state = jax.random.normal(k_x, (B, S, H)).astype(jnp.bfloat16)

    # Confidence-layer parameters.  w1 stored (in, out) in bf16 for the MXU;
    # w2 stored as the torch nn.Linear(256, 1) weight row (1, 256) in f32.
    w1 = (jax.random.normal(k_w1, (H, HMID)) * (1.0 / (H ** 0.5))).astype(jnp.bfloat16)
    b1 = jax.random.normal(k_b1, (1, HMID), dtype=jnp.float32) * 0.01
    w2 = jax.random.normal(k_w2, (1, HMID), dtype=jnp.float32) * (1.0 / (HMID ** 0.5))
    b2 = jax.random.normal(k_b2, (1, 1), dtype=jnp.float32) * 0.01

    out = confidence_head(last_hidden_state, w1, b1, w2, b2)
    out = jax.block_until_ready(out)

    ref = reference_head(last_hidden_state, w1, b1, w2, b2)
    assert out.shape == (B, 1), out.shape
    assert jnp.allclose(out, ref, atol=1e-3, rtol=1e-3), (out, ref)

    print("KERNEL_OK")
</pallas_src>

<mosaic_0001>
module attributes {stable_mosaic.version = 11 : i64} {
  func.func @confidence_kernel(%arg0: i32, %arg1: memref<2x768xbf16, #tpu.memory_space<vmem>>, %arg2: memref<768x256xbf16, #tpu.memory_space<vmem>>, %arg3: memref<1x256xf32, #tpu.memory_space<vmem>>, %arg4: memref<1x256xf32, #tpu.memory_space<vmem>>, %arg5: memref<1x1xf32, #tpu.memory_space<vmem>>, %arg6: memref<2x1xf32, #tpu.memory_space<vmem>>) attributes {dimension_semantics = [#tpu.dimension_semantics<parallel>], iteration_bounds = array<i64: 1>, scalar_prefetch = 0 : i64, scratch_operands = 0 : i64, tpu.core_type = #tpu.core_type<tc>, window_params = [{transform_indices = @transform_0, window_bounds = array<i64: 2, 768>}, {pipeline_mode = #tpu.pipeline_mode<synchronous>, transform_indices = @transform_1, window_bounds = array<i64: 768, 256>}, {pipeline_mode = #tpu.pipeline_mode<synchronous>, transform_indices = @transform_2, window_bounds = array<i64: 1, 256>}, {pipeline_mode = #tpu.pipeline_mode<synchronous>, transform_indices = @transform_3, window_bounds = array<i64: 1, 256>}, {pipeline_mode = #tpu.pipeline_mode<synchronous>, transform_indices = @transform_4, window_bounds = array<i64: 1, 1>}, {transform_indices = @transform_5, window_bounds = array<i64: 2, 1>}]} {
    %c0 = arith.constant 0 : index
    %c0_0 = arith.constant 0 : index
    %0 = vector.load %arg1[%c0, %c0_0] : memref<2x768xbf16, #tpu.memory_space<vmem>>, vector<2x768xbf16>
    %c0_1 = arith.constant 0 : index
    %c0_2 = arith.constant 0 : index
    %1 = vector.load %arg2[%c0_1, %c0_2] : memref<768x256xbf16, #tpu.memory_space<vmem>>, vector<768x256xbf16>
    %cst = arith.constant dense<0.000000e+00> : vector<2x256xf32>
    %2 = tpu.matmul %0, %1, %cst {dimension_numbers = #tpu.dot_dimension_numbers<[1], [0], [0], [1], [0, 0, 1, 1], [], []>} : vector<2x768xbf16>, vector<768x256xbf16>, vector<2x256xf32> -> vector<2x256xf32>
    %c0_3 = arith.constant 0 : index
    %c0_4 = arith.constant 0 : index
    %3 = vector.load %arg3[%c0_3, %c0_4] : memref<1x256xf32, #tpu.memory_space<vmem>>, vector<1x256xf32>
    %4 = vector.broadcast %3 : vector<1x256xf32> to vector<2x256xf32>
    %5 = arith.addf %2, %4 : vector<2x256xf32>
    %cst_5 = arith.constant 0.000000e+00 : f32
    %6 = vector.broadcast %cst_5 : f32 to vector<2x256xf32>
    %7 = arith.maximumf %5, %6 : vector<2x256xf32>
    %c0_6 = arith.constant 0 : index
    %c0_7 = arith.constant 0 : index
    %8 = vector.load %arg4[%c0_6, %c0_7] : memref<1x256xf32, #tpu.memory_space<vmem>>, vector<1x256xf32>
    %9 = vector.broadcast %8 : vector<1x256xf32> to vector<2x256xf32>
    %10 = arith.mulf %7, %9 : vector<2x256xf32>
    %cst_8 = arith.constant dense<0.000000e+00> : vector<2xf32>
    %11 = vector.multi_reduction <add>, %10, %cst_8 [1] : vector<2x256xf32> to vector<2xf32>
    %12 = vector.shape_cast %11 : vector<2xf32> to vector<2x1xf32>
    %c0_9 = arith.constant 0 : index
    %c0_10 = arith.constant 0 : index
    %13 = vector.load %arg5[%c0_9, %c0_10] : memref<1x1xf32, #tpu.memory_space<vmem>>, vector<1x1xf32>
    %14 = vector.broadcast %13 : vector<1x1xf32> to vector<2x1xf32>
    %15 = arith.addf %12, %14 : vector<2x1xf32>
    %16 = arith.negf %15 : vector<2x1xf32>
    %17 = math.exp %16 : vector<2x1xf32>
    %cst_11 = arith.constant 1.000000e+00 : f32
    %18 = vector.broadcast %cst_11 : f32 to vector<2x1xf32>
    %19 = arith.addf %18, %17 : vector<2x1xf32>
    %20 = arith.divf %18, %19 : vector<2x1xf32>
    %c0_12 = arith.constant 0 : index
    %c0_13 = arith.constant 0 : index
    %21 = vector.load %arg6[%c0_12, %c0_13] : memref<2x1xf32, #tpu.memory_space<vmem>>, vector<2x1xf32>
    tpu.vector_store %arg6[%c0_12, %c0_13], %20 {strides = array<i32>} : memref<2x1xf32, #tpu.memory_space<vmem>>, vector<2x1xf32>,
    return
  }
  func.func @transform_0(%arg0: i32) -> (i32, i32) {
    %c0_i32 = arith.constant 0 : i32
    %c0_i32_0 = arith.constant 0 : i32
    return %arg0, %c0_i32 : i32, i32
  }
  func.func @transform_1(%arg0: i32) -> (i32, i32) {
    %c0_i32 = arith.constant 0 : i32
    %c0_i32_0 = arith.constant 0 : i32
    %c0_i32_1 = arith.constant 0 : i32
    return %c0_i32, %c0_i32_0 : i32, i32
  }
  func.func @transform_2(%arg0: i32) -> (i32, i32) {
    %c0_i32 = arith.constant 0 : i32
    %c0_i32_0 = arith.constant 0 : i32
    %c0_i32_1 = arith.constant 0 : i32
    return %c0_i32, %c0_i32_0 : i32, i32
  }
  func.func @transform_3(%arg0: i32) -> (i32, i32) {
    %c0_i32 = arith.constant 0 : i32
    %c0_i32_0 = arith.constant 0 : i32
    %c0_i32_1 = arith.constant 0 : i32
    return %c0_i32, %c0_i32_0 : i32, i32
  }
  func.func @transform_4(%arg0: i32) -> (i32, i32) {
    %c0_i32 = arith.constant 0 : i32
    %c0_i32_0 = arith.constant 0 : i32
    %c0_i32_1 = arith.constant 0 : i32
    return %c0_i32, %c0_i32_0 : i32, i32
  }
  func.func @transform_5(%arg0: i32) -> (i32, i32) {
    %c0_i32 = arith.constant 0 : i32
    %c0_i32_0 = arith.constant 0 : i32
    return %arg0, %c0_i32 : i32, i32
  }
}

</mosaic_0001>

<llo_original>
// kernel: tpu_custom_call.1
$region0: #{tpu_custom_call.1}
  #allocation0 [shape = 'u32[]', space=smem, size = 0x4, offset = 0x4, fixed_abs, tag = 'smem constant byte address 0x4 - core index']
  #allocation1 [shape = 'u32[72,128]{1,0:T(1,128)}', space=vmem, size = 0x9000, scoped, tag = 'internal scratch']
  #allocation2 [shape = 'f32[1,1]{1,0:T(1,128)S(1)}', space=vmem, size = 0x200, scoped, tag = 'scoped memory for tpu_custom_call.1']
  %s0 = inlined_call_operand.hbm [shape: bf16[2,768], index: 0, kind: input, shape index: {}]
  %s1 = inlined_call_operand.hbm [shape: bf16[768,256], index: 1, kind: input, shape index: {}]
  %s2 = inlined_call_operand.vmem [shape: f32[1,256], index: 2, kind: input, shape index: {}]
  %s3 = inlined_call_operand.vmem [shape: f32[1,256], index: 3, kind: input, shape index: {}]
  %s4 = inlined_call_operand.<no memory space> [shape: f32[1,1], index: 4, kind: input, shape index: {}]
  %s5 = inlined_call_operand.vmem [shape: f32[2,1], index: 5, kind: output, shape index: {}]
  %s6 = sld [smem:[#allocation0]]
  $region38: #{tpu_custom_call.1} parent=0
    _
  %s8 = ssub.s32 1, %s6
  %s9 = scalar_select 0, %s8, %s6
  %v10 = vstv %s4
  %11 = vst [vmem:[#allocation2] sm:$0x1] %v10
  $region1: #{tpu_custom_call.1} parent=0
    #allocation3 [shape = 'u8[3072]{0}', space=vmem, size = 0xc00, scoped, tag = 'input window, operand 0, single buffered']
    #allocation4 [shape = 's32[1]{0}', space=sflag, size = 0x4, scoped, tag = 'scoped memory for tpu_custom_call.1']
    #allocation5 [shape = 'u8[393216]{0}', space=vmem, size = 0x60000, scoped, tag = 'input window, operand 1, single buffered']
    #allocation6 [shape = 's32[1]{0}', space=sflag, size = 0x4, scoped, tag = 'scoped memory for tpu_custom_call.1']
    %12 = vsyncpa [#allocation4], 0
    %13 = vsyncpa [#allocation6], 0
    // Predicated region
    $region2: #{tpu_custom_call.1} parent=1 // pred_check
      _
    $region3: #{tpu_custom_call.1} parent=1 // pred_check_branch
      %15 = sbr.rel (0) target = $region5
    $region4: #{tpu_custom_call.1} parent=1 // pred_region
      %17 = vsyncadd [#allocation4], 0
      %s19 = sshll.u32 %s0, 4
      %s20 = int_to_ptr.hbm [resolvable:$true] %s19
      %s21 = sshll.u32 [#allocation3], 4
      %s22 = int_to_ptr.vmem [resolvable:$true] %s21
      %24 = dma.hbm_to_vmem [thread:$0]  %s20, 96, %s22, [#allocation4]
    $region5: #{tpu_custom_call.1} parent=1 // pred_fallthru
      _
    // Predicated region
    $region6: #{tpu_custom_call.1} parent=1 // pred_check
      _
    $region7: #{tpu_custom_call.1} parent=1 // pred_check_branch
      %26 = sbr.rel (0) target = $region9
    $region8: #{tpu_custom_call.1} parent=1 // pred_region
      %28 = vsyncadd [#allocation6], 0
      %s29 = sshll.u32 %s1, 4
      %s30 = int_to_ptr.hbm [resolvable:$true] %s29
      %s31 = sshll.u32 [#allocation5], 4
      %s32 = int_to_ptr.vmem [resolvable:$true] %s31
      %37 = dma.hbm_to_vmem [thread:$0]  %s30, 12288, %s32, [#allocation6], 128, 128, 8
    $region9: #{tpu_custom_call.1} parent=1 // pred_fallthru
      _
    // Predicated region
    $region10: #{tpu_custom_call.1} parent=1 // pred_check
      _
    $region11: #{tpu_custom_call.1} parent=1 // pred_check_branch
      %39 = sbr.rel (0) target = $region13
    $region12: #{tpu_custom_call.1} parent=1 // pred_region
      _
    $region13: #{tpu_custom_call.1} parent=1 // pred_fallthru
      _
    // Predicated region
    $region14: #{tpu_custom_call.1} parent=1 // pred_check
      _
    $region15: #{tpu_custom_call.1} parent=1 // pred_check_branch
      %41 = sbr.rel (0) target = $region17
    $region16: #{tpu_custom_call.1} parent=1 // pred_region
      _
    $region17: #{tpu_custom_call.1} parent=1 // pred_fallthru
      _
    // Predicated region
    $region18: #{tpu_custom_call.1} parent=1 // pred_check
      _
    $region19: #{tpu_custom_call.1} parent=1 // pred_check_branch
      %43 = sbr.rel (0) target = $region21
    $region20: #{tpu_custom_call.1} parent=1 // pred_region
      _
    $region21: #{tpu_custom_call.1} parent=1 // pred_fallthru
      _
    // Predicated region
    $region22: #{tpu_custom_call.1} parent=1 // pred_check
      _
    $region23: #{tpu_custom_call.1} parent=1 // pred_check_branch
      %45 = sbr.rel (0) target = $region25
    $region24: #{tpu_custom_call.1} parent=1 // pred_region
      %47 = dma.done [#allocation4], 96
    $region25: #{tpu_custom_call.1} parent=1 // pred_fallthru
      _
    // Predicated region
    $region26: #{tpu_custom_call.1} parent=1 // pred_check
      _
    $region27: #{tpu_custom_call.1} parent=1 // pred_check_branch
      %49 = sbr.rel (0) target = $region29
    $region28: #{tpu_custom_call.1} parent=1 // pred_region
      %51 = dma.done [#allocation6], 12288
    $region29: #{tpu_custom_call.1} parent=1 // pred_fallthru
      _
    %v52 = vld [vmem:[#allocation3] sm:$0x3f]
    %v53 = vld [vmem:[#allocation5] sm:$0xff]
    %v54 = vld [vmem:[#allocation5 + $0x8] sm:$0xff]
    %v55 = vld [vmem:[#allocation5 + $0x10] sm:$0xff]
    %v56 = vld [vmem:[#allocation5 + $0x18] sm:$0xff]
    %v57 = vld [vmem:[#allocation5 + $0x20] sm:$0xff]
    %v58 = vld [vmem:[#allocation5 + $0x28] sm:$0xff]
    %v59 = vld [vmem:[#allocation5 + $0x30] sm:$0xff]
    %v60 = vld [vmem:[#allocation5 + $0x38] sm:$0xff]
    %v61 = vld [vmem:[#allocation5 + $0x40] sm:$0xff]
    %v62 = vld [vmem:[#allocation5 + $0x48] sm:$0xff]
    %v63 = vld [vmem:[#allocation5 + $0x50] sm:$0xff]
    %v64 = vld [vmem:[#allocation5 + $0x58] sm:$0xff]
    %v65 = vld [vmem:[#allocation5 + $0x60] sm:$0xff]
    %v66 = vld [vmem:[#allocation5 + $0x68] sm:$0xff]
    %v67 = vld [vmem:[#allocation5 + $0x70] sm:$0xff]
    %v68 = vld [vmem:[#allocation5 + $0x78] sm:$0xff]
    %v69 = vld [vmem:[#allocation5 + $0x80] sm:$0xff]
    %v70 = vld [vmem:[#allocation5 + $0x88] sm:$0xff]
    %v71 = vld [vmem:[#allocation5 + $0x90] sm:$0xff]
    %v72 = vld [vmem:[#allocation5 + $0x98] sm:$0xff]
    %v73 = vld [vmem:[#allocation5 + $0xa0] sm:$0xff]
    %v74 = vld [vmem:[#allocation5 + $0xa8] sm:$0xff]
    %v75 = vld [vmem:[#allocation5 + $0xb0] sm:$0xff]
    %v76 = vld [vmem:[#allocation5 + $0xb8] sm:$0xff]
    %v77 = vld [vmem:[#allocation5 + $0xc0] sm:$0xff]
    %v78 = vld [vmem:[#allocation5 + $0xc8] sm:$0xff]
    %v79 = vld [vmem:[#allocation5 + $0xd0] sm:$0xff]
    %v80 = vld [vmem:[#allocation5 + $0xd8] sm:$0xff]
    %v81 = vld [vmem:[#allocation5 + $0xe0] sm:$0xff]
    %v82 = vld [vmem:[#allocation5 + $0xe8] sm:$0xff]
    %v83 = vld [vmem:[#allocation5 + $0xf0] sm:$0xff]
    %v84 = vld [vmem:[#allocation5 + $0xf8] sm:$0xff]
    %v85 = vld [vmem:[#allocation5 + $0x100] sm:$0xff]
    %v86 = vld [vmem:[#allocation5 + $0x108] sm:$0xff]
    %v87 = vld [vmem:[#allocation5 + $0x110] sm:$0xff]
    %v88 = vld [vmem:[#allocation5 + $0x118] sm:$0xff]
    %v89 = vld [vmem:[#allocation5 + $0x120] sm:$0xff]
    %v90 = vld [vmem:[#allocation5 + $0x128] sm:$0xff]
    %v91 = vld [vmem:[#allocation5 + $0x130] sm:$0xff]
    %v92 = vld [vmem:[#allocation5 + $0x138] sm:$0xff]
    %v93 = vld [vmem:[#allocation5 + $0x140] sm:$0xff]
    %v94 = vld [vmem:[#allocation5 + $0x148] sm:$0xff]
    %v95 = vld [vmem:[#allocation5 + $0x150] sm:$0xff]
    %v96 = vld [vmem:[#allocation5 + $0x158] sm:$0xff]
    %v97 = vld [vmem:[#allocation5 + $0x160] sm:$0xff]
    %v98 = vld [vmem:[#allocation5 + $0x168] sm:$0xff]
    %v99 = vld [vmem:[#allocation5 + $0x170] sm:$0xff]
    %v100 = vld [vmem:[#allocation5 + $0x178] sm:$0xff]
    %v101 = vld [vmem:[#allocation5 + $0x180] sm:$0xff]
    %v102 = vld [vmem:[#allocation5 + $0x188] sm:$0xff]
    %v103 = vld [vmem:[#allocation5 + $0x190] sm:$0xff]
    %v104 = vld [vmem:[#allocation5 + $0x198] sm:$0xff]
    %v105 = vld [vmem:[#allocation5 + $0x1a0] sm:$0xff]
    %v106 = vld [vmem:[#allocation5 + $0x1a8] sm:$0xff]
    %v107 = vld [vmem:[#allocation5 + $0x1b0] sm:$0xff]
    %v108 = vld [vmem:[#allocation5 + $0x1b8] sm:$0xff]
    %v109 = vld [vmem:[#allocation5 + $0x1c0] sm:$0xff]
    %v110 = vld [vmem:[#allocation5 + $0x1c8] sm:$0xff]
    %v111 = vld [vmem:[#allocation5 + $0x1d0] sm:$0xff]
    %v112 = vld [vmem:[#allocation5 + $0x1d8] sm:$0xff]
    %v113 = vld [vmem:[#allocation5 + $0x1e0] sm:$0xff]
    %v114 = vld [vmem:[#allocation5 + $0x1e8] sm:$0xff]
    %v115 = vld [vmem:[#allocation5 + $0x1f0] sm:$0xff]
    %v116 = vld [vmem:[#allocation5 + $0x1f8] sm:$0xff]
    %v117 = vld [vmem:[#allocation5 + $0x200] sm:$0xff]
    %v118 = vld [vmem:[#allocation5 + $0x208] sm:$0xff]
    %v119 = vld [vmem:[#allocation5 + $0x210] sm:$0xff]
    %v120 = vld [vmem:[#allocation5 + $0x218] sm:$0xff]
    %v121 = vld [vmem:[#allocation5 + $0x220] sm:$0xff]
    %v122 = vld [vmem:[#allocation5 + $0x228] sm:$0xff]
    %v123 = vld [vmem:[#allocation5 + $0x230] sm:$0xff]
    %v124 = vld [vmem:[#allocation5 + $0x238] sm:$0xff]
    %v125 = vld [vmem:[#allocation5 + $0x240] sm:$0xff]
    %v126 = vld [vmem:[#allocation5 + $0x248] sm:$0xff]
    %v127 = vld [vmem:[#allocation5 + $0x250] sm:$0xff]
    %v128 = vld [vmem:[#allocation5 + $0x258] sm:$0xff]
    %v129 = vld [vmem:[#allocation5 + $0x260] sm:$0xff]
    %v130 = vld [vmem:[#allocation5 + $0x268] sm:$0xff]
    %v131 = vld [vmem:[#allocation5 + $0x270] sm:$0xff]
    %v132 = vld [vmem:[#allocation5 + $0x278] sm:$0xff]
    %v133 = vld [vmem:[#allocation5 + $0x280] sm:$0xff]
    %v134 = vld [vmem:[#allocation5 + $0x288] sm:$0xff]
    %v135 = vld [vmem:[#allocation5 + $0x290] sm:$0xff]
    %v136 = vld [vmem:[#allocation5 + $0x298] sm:$0xff]
    %v137 = vld [vmem:[#allocation5 + $0x2a0] sm:$0xff]
    %v138 = vld [vmem:[#allocation5 + $0x2a8] sm:$0xff]
    %v139 = vld [vmem:[#allocation5 + $0x2b0] sm:$0xff]
    %v140 = vld [vmem:[#allocation5 + $0x2b8] sm:$0xff]
    %v141 = vld [vmem:[#allocation5 + $0x2c0] sm:$0xff]
    %v142 = vld [vmem:[#allocation5 + $0x2c8] sm:$0xff]
    %v143 = vld [vmem:[#allocation5 + $0x2d0] sm:$0xff]
    %v144 = vld [vmem:[#allocation5 + $0x2d8] sm:$0xff]
    %v145 = vld [vmem:[#allocation5 + $0x2e0] sm:$0xff]
    %v146 = vld [vmem:[#allocation5 + $0x2e8] sm:$0xff]
    %v147 = vld [vmem:[#allocation5 + $0x2f0] sm:$0xff]
    %v148 = vld [vmem:[#allocation5 + $0x2f8] sm:$0xff]
    %v149 = vld [vmem:[%s2] sm:$0x3]
    %v151 = vperm.slane %v149, 0
    %v152 = vperm.slane %v149, 1
    %156 = vst [vmem:[#allocation1] ss:$9 sm:$0xff] %v52
    %v157 = vld [vmem:[#allocation1] sm:$0xff]
    %v158 = vld [vmem:[#allocation1 + $0x9] sm:$0xff]
    %v159 = vld [vmem:[#allocation1 + $0x12] sm:$0xff]
    %v160 = vld [vmem:[#allocation1 + $0x1b] sm:$0xff]
    %v161 = vld [vmem:[#allocation1 + $0x24] sm:$0xff]
    %v162 = vld [vmem:[#allocation1 + $0x2d] sm:$0xff]
    %v265 = vunpack.c.l.b16 %v53
    %v266 = vunpack.c.h.b16 %v53
    %v267 = vunpack.c.l.b16 %v54
    %v268 = vunpack.c.h.b16 %v54
    %v269 = vunpack.c.l.b16 %v55
    %v270 = vunpack.c.h.b16 %v55
    %v271 = vunpack.c.l.b16 %v56
    %v272 = vunpack.c.h.b16 %v56
    %v273 = vunpack.c.l.b16 %v57
    %v274 = vunpack.c.h.b16 %v57
    %v275 = vunpack.c.l.b16 %v58
    %v276 = vunpack.c.h.b16 %v58
    %v277 = vunpack.c.l.b16 %v59
    %v278 = vunpack.c.h.b16 %v59
    %v279 = vunpack.c.l.b16 %v60
    %v280 = vunpack.c.h.b16 %v60
    %v281 = vunpack.c.l.b16 %v61
    %v282 = vunpack.c.h.b16 %v61
    %v283 = vunpack.c.l.b16 %v62
    %v284 = vunpack.c.h.b16 %v62
    %v285 = vunpack.c.l.b16 %v63
    %v286 = vunpack.c.h.b16 %v63
    %v287 = vunpack.c.l.b16 %v64
    %v288 = vunpack.c.h.b16 %v64
    %v289 = vunpack.c.l.b16 %v65
    %v290 = vunpack.c.h.b16 %v65
    %v291 = vunpack.c.l.b16 %v66
    %v292 = vunpack.c.h.b16 %v66
    %v293 = vunpack.c.l.b16 %v67
    %v294 = vunpack.c.h.b16 %v67
    %v295 = vunpack.c.l.b16 %v68
    %v296 = vunpack.c.h.b16 %v68
    %v297 = vunpack.c.l.b16 %v69
    %v298 = vunpack.c.h.b16 %v69
    %v299 = vunpack.c.l.b16 %v70
    %v300 = vunpack.c.h.b16 %v70
    %v301 = vunpack.c.l.b16 %v71
    %v302 = vunpack.c.h.b16 %v71
    %v303 = vunpack.c.l.b16 %v72
    %v304 = vunpack.c.h.b16 %v72
    %v305 = vunpack.c.l.b16 %v73
    %v306 = vunpack.c.h.b16 %v73
    %v307 = vunpack.c.l.b16 %v74
    %v308 = vunpack.c.h.b16 %v74
    %v309 = vunpack.c.l.b16 %v75
    %v310 = vunpack.c.h.b16 %v75
    %v311 = vunpack.c.l.b16 %v76
    %v312 = vunpack.c.h.b16 %v76
    %v313 = vunpack.c.l.b16 %v77
    %v314 = vunpack.c.h.b16 %v77
    %v315 = vunpack.c.l.b16 %v78
    %v316 = vunpack.c.h.b16 %v78
    %v317 = vunpack.c.l.b16 %v79
    %v318 = vunpack.c.h.b16 %v79
    %v319 = vunpack.c.l.b16 %v80
    %v320 = vunpack.c.h.b16 %v80
    %v321 = vunpack.c.l.b16 %v81
    %v322 = vunpack.c.h.b16 %v81
    %v323 = vunpack.c.l.b16 %v82
    %v324 = vunpack.c.h.b16 %v82
    %v325 = vunpack.c.l.b16 %v83
    %v326 = vunpack.c.h.b16 %v83
    %v327 = vunpack.c.l.b16 %v84
    %v328 = vunpack.c.h.b16 %v84
    %v329 = vunpack.c.l.b16 %v85
    %v330 = vunpack.c.h.b16 %v85
    %v331 = vunpack.c.l.b16 %v86
    %v332 = vunpack.c.h.b16 %v86
    %v333 = vunpack.c.l.b16 %v87
    %v334 = vunpack.c.h.b16 %v87
    %v335 = vunpack.c.l.b16 %v88
    %v336 = vunpack.c.h.b16 %v88
    %v337 = vunpack.c.l.b16 %v89
    %v338 = vunpack.c.h.b16 %v89
    %v339 = vunpack.c.l.b16 %v90
    %v340 = vunpack.c.h.b16 %v90
    %v341 = vunpack.c.l.b16 %v91
    %v342 = vunpack.c.h.b16 %v91
    %v343 = vunpack.c.l.b16 %v92
    %v344 = vunpack.c.h.b16 %v92
    %v345 = vunpack.c.l.b16 %v93
    %v346 = vunpack.c.h.b16 %v93
    %v347 = vunpack.c.l.b16 %v94
    %v348 = vunpack.c.h.b16 %v94
    %v349 = vunpack.c.l.b16 %v95
    %v350 = vunpack.c.h.b16 %v95
    %v351 = vunpack.c.l.b16 %v96
    %v352 = vunpack.c.h.b16 %v96
    %v353 = vunpack.c.l.b16 %v97
    %v354 = vunpack.c.h.b16 %v97
    %v355 = vunpack.c.l.b16 %v98
    %v356 = vunpack.c.h.b16 %v98
    %v357 = vunpack.c.l.b16 %v99
    %v358 = vunpack.c.h.b16 %v99
    %v359 = vunpack.c.l.b16 %v100
    %v360 = vunpack.c.h.b16 %v100
    %v361 = vunpack.c.l.b16 %v101
    %v362 = vunpack.c.h.b16 %v101
    %v363 = vunpack.c.l.b16 %v102
    %v364 = vunpack.c.h.b16 %v102
    %v365 = vunpack.c.l.b16 %v103
    %v366 = vunpack.c.h.b16 %v103
    %v367 = vunpack.c.l.b16 %v104
    %v368 = vunpack.c.h.b16 %v104
    %v369 = vunpack.c.l.b16 %v105
    %v370 = vunpack.c.h.b16 %v105
    %v371 = vunpack.c.l.b16 %v106
    %v372 = vunpack.c.h.b16 %v106
    %v373 = vunpack.c.l.b16 %v107
    %v374 = vunpack.c.h.b16 %v107
    %v375 = vunpack.c.l.b16 %v108
    %v376 = vunpack.c.h.b16 %v108
    %v377 = vunpack.c.l.b16 %v109
    %v378 = vunpack.c.h.b16 %v109
    %v379 = vunpack.c.l.b16 %v110
    %v380 = vunpack.c.h.b16 %v110
    %v381 = vunpack.c.l.b16 %v111
    %v382 = vunpack.c.h.b16 %v111
    %v383 = vunpack.c.l.b16 %v112
    %v384 = vunpack.c.h.b16 %v112
    %v385 = vunpack.c.l.b16 %v113
    %v386 = vunpack.c.h.b16 %v113
    %v387 = vunpack.c.l.b16 %v114
    %v388 = vunpack.c.h.b16 %v114
    %v389 = vunpack.c.l.b16 %v115
    %v390 = vunpack.c.h.b16 %v115
    %v391 = vunpack.c.l.b16 %v116
    %v392 = vunpack.c.h.b16 %v116
    %v393 = vunpack.c.l.b16 %v117
    %v394 = vunpack.c.h.b16 %v117
    %v395 = vunpack.c.l.b16 %v118
    %v396 = vunpack.c.h.b16 %v118
    %v397 = vunpack.c.l.b16 %v119
    %v398 = vunpack.c.h.b16 %v119
    %v399 = vunpack.c.l.b16 %v120
    %v400 = vunpack.c.h.b16 %v120
    %v401 = vunpack.c.l.b16 %v121
    %v402 = vunpack.c.h.b16 %v121
    %v403 = vunpack.c.l.b16 %v122
    %v404 = vunpack.c.h.b16 %v122
    %v405 = vunpack.c.l.b16 %v123
    %v406 = vunpack.c.h.b16 %v123
    %v407 = vunpack.c.l.b16 %v124
    %v408 = vunpack.c.h.b16 %v124
    %v409 = vunpack.c.l.b16 %v125
    %v410 = vunpack.c.h.b16 %v125
    %v411 = vunpack.c.l.b16 %v126
    %v412 = vunpack.c.h.b16 %v126
    %v413 = vunpack.c.l.b16 %v127
    %v414 = vunpack.c.h.b16 %v127
    %v415 = vunpack.c.l.b16 %v128
    %v416 = vunpack.c.h.b16 %v128
    %v417 = vunpack.c.l.b16 %v129
    %v418 = vunpack.c.h.b16 %v129
    %v419 = vunpack.c.l.b16 %v130
    %v420 = vunpack.c.h.b16 %v130
    %v421 = vunpack.c.l.b16 %v131
    %v422 = vunpack.c.h.b16 %v131
    %v423 = vunpack.c.l.b16 %v132
    %v424 = vunpack.c.h.b16 %v132
    %v425 = vunpack.c.l.b16 %v133
    %v426 = vunpack.c.h.b16 %v133
    %v427 = vunpack.c.l.b16 %v134
    %v428 = vunpack.c.h.b16 %v134
    %v429 = vunpack.c.l.b16 %v135
    %v430 = vunpack.c.h.b16 %v135
    %v431 = vunpack.c.l.b16 %v136
    %v432 = vunpack.c.h.b16 %v136
    %v433 = vunpack.c.l.b16 %v137
    %v434 = vunpack.c.h.b16 %v137
    %v435 = vunpack.c.l.b16 %v138
    %v436 = vunpack.c.h.b16 %v138
    %v437 = vunpack.c.l.b16 %v139
    %v438 = vunpack.c.h.b16 %v139
    %v439 = vunpack.c.l.b16 %v140
    %v440 = vunpack.c.h.b16 %v140
    %v441 = vunpack.c.l.b16 %v141
    %v442 = vunpack.c.h.b16 %v141
    %v443 = vunpack.c.l.b16 %v142
    %v444 = vunpack.c.h.b16 %v142
    %v445 = vunpack.c.l.b16 %v143
    %v446 = vunpack.c.h.b16 %v143
    %v447 = vunpack.c.l.b16 %v144
    %v448 = vunpack.c.h.b16 %v144
    %v449 = vunpack.c.l.b16 %v145
    %v450 = vunpack.c.h.b16 %v145
    %v451 = vunpack.c.l.b16 %v146
    %v452 = vunpack.c.h.b16 %v146
    %v453 = vunpack.c.l.b16 %v147
    %v454 = vunpack.c.h.b16 %v147
    %v455 = vunpack.c.l.b16 %v148
    %v456 = vunpack.c.h.b16 %v148
    %v457 = vpack.c.b16 %v267, %v265
    %v458 = vpack.c.b16 %v268, %v266
    %v459 = vpack.c.b16 %v271, %v269
    %v460 = vpack.c.b16 %v272, %v270
    %v461 = vpack.c.b16 %v275, %v273
    %v462 = vpack.c.b16 %v276, %v274
    %v463 = vpack.c.b16 %v279, %v277
    %v464 = vpack.c.b16 %v280, %v278
    %v465 = vpack.c.b16 %v283, %v281
    %v466 = vpack.c.b16 %v284, %v282
    %v467 = vpack.c.b16 %v287, %v285
    %v468 = vpack.c.b16 %v288, %v286
    %v469 = vpack.c.b16 %v291, %v289
    %v470 = vpack.c.b16 %v292, %v290
    %v471 = vpack.c.b16 %v295, %v293
    %v472 = vpack.c.b16 %v296, %v294
    %v473 = vpack.c.b16 %v299, %v297
    %v474 = vpack.c.b16 %v300, %v298
    %v475 = vpack.c.b16 %v303, %v301
    %v476 = vpack.c.b16 %v304, %v302
    %v477 = vpack.c.b16 %v307, %v305
    %v478 = vpack.c.b16 %v308, %v306
    %v479 = vpack.c.b16 %v311, %v309
    %v480 = vpack.c.b16 %v312, %v310
    %v481 = vpack.c.b16 %v315, %v313
    %v482 = vpack.c.b16 %v316, %v314
    %v483 = vpack.c.b16 %v319, %v317
    %v484 = vpack.c.b16 %v320, %v318
    %v485 = vpack.c.b16 %v323, %v321
    %v486 = vpack.c.b16 %v324, %v322
    %v487 = vpack.c.b16 %v327, %v325
    %v488 = vpack.c.b16 %v328, %v326
    %v489 = vpack.c.b16 %v331, %v329
    %v490 = vpack.c.b16 %v332, %v330
    %v491 = vpack.c.b16 %v335, %v333
    %v492 = vpack.c.b16 %v336, %v334
    %v493 = vpack.c.b16 %v339, %v337
    %v494 = vpack.c.b16 %v340, %v338
    %v495 = vpack.c.b16 %v343, %v341
    %v496 = vpack.c.b16 %v344, %v342
    %v497 = vpack.c.b16 %v347, %v345
    %v498 = vpack.c.b16 %v348, %v346
    %v499 = vpack.c.b16 %v351, %v349
    %v500 = vpack.c.b16 %v352, %v350
    %v501 = vpack.c.b16 %v355, %v353
    %v502 = vpack.c.b16 %v356, %v354
    %v503 = vpack.c.b16 %v359, %v357
    %v504 = vpack.c.b16 %v360, %v358
    %v505 = vpack.c.b16 %v363, %v361
    %v506 = vpack.c.b16 %v364, %v362
    %v507 = vpack.c.b16 %v367, %v365
    %v508 = vpack.c.b16 %v368, %v366
    %v509 = vpack.c.b16 %v371, %v369
    %v510 = vpack.c.b16 %v372, %v370
    %v511 = vpack.c.b16 %v375, %v373
    %v512 = vpack.c.b16 %v376, %v374
    %v513 = vpack.c.b16 %v379, %v377
    %v514 = vpack.c.b16 %v380, %v378
    %v515 = vpack.c.b16 %v383, %v381
    %v516 = vpack.c.b16 %v384, %v382
    %v517 = vpack.c.b16 %v387, %v385
    %v518 = vpack.c.b16 %v388, %v386
    %v519 = vpack.c.b16 %v391, %v389
    %v520 = vpack.c.b16 %v392, %v390
    %v521 = vpack.c.b16 %v395, %v393
    %v522 = vpack.c.b16 %v396, %v394
    %v523 = vpack.c.b16 %v399, %v397
    %v524 = vpack.c.b16 %v400, %v398
    %v525 = vpack.c.b16 %v403, %v401
    %v526 = vpack.c.b16 %v404, %v402
    %v527 = vpack.c.b16 %v407, %v405
    %v528 = vpack.c.b16 %v408, %v406
    %v529 = vpack.c.b16 %v411, %v409
    %v530 = vpack.c.b16 %v412, %v410
    %v531 = vpack.c.b16 %v415, %v413
    %v532 = vpack.c.b16 %v416, %v414
    %v533 = vpack.c.b16 %v419, %v417
    %v534 = vpack.c.b16 %v420, %v418
    %v535 = vpack.c.b16 %v423, %v421
    %v536 = vpack.c.b16 %v424, %v422
    %v537 = vpack.c.b16 %v427, %v425
    %v538 = vpack.c.b16 %v428, %v426
    %v539 = vpack.c.b16 %v431, %v429
    %v540 = vpack.c.b16 %v432, %v430
    %v541 = vpack.c.b16 %v435, %v433
    %v542 = vpack.c.b16 %v436, %v434
    %v543 = vpack.c.b16 %v439, %v437
    %v544 = vpack.c.b16 %v440, %v438
    %v545 = vpack.c.b16 %v443, %v441
    %v546 = vpack.c.b16 %v444, %v442
    %v547 = vpack.c.b16 %v447, %v445
    %v548 = vpack.c.b16 %v448, %v446
    %v549 = vpack.c.b16 %v451, %v449
    %v550 = vpack.c.b16 %v452, %v450
    %v551 = vpack.c.b16 %v455, %v453
    %v552 = vpack.c.b16 %v456, %v454
    %649 = vmatpush.bf16.msra.mxu0 %v471
    %650 = vmatpush.bf16.msra.mxu0 %v469
    %651 = vmatpush.bf16.msra.mxu0 %v467
    %652 = vmatpush.bf16.msra.mxu0 %v465
    %653 = vmatpush.bf16.msra.mxu0 %v463
    %654 = vmatpush.bf16.msra.mxu0 %v461
    %655 = vmatpush.bf16.msra.mxu0 %v459
    %656 = vmatpush.bf16.msra.mxu0 %v457
    %657 = vmatmul.bf16.gmra.mxu0 %v157
    %v658 = vpop.f32.mrf.mxu0
    %v659 = vadd.f32 %v151, %v658
    %v660 = vpop.f32.mrf.mxu0
    %661 = vdwg.mxu0
    %662 = vmatpush.bf16.msra.mxu0 %v487
    %663 = vmatpush.bf16.msra.mxu0 %v485
    %664 = vmatpush.bf16.msra.mxu0 %v483
    %665 = vmatpush.bf16.msra.mxu0 %v481
    %666 = vmatpush.bf16.msra.mxu0 %v479
    %667 = vmatpush.bf16.msra.mxu0 %v477
    %668 = vmatpush.bf16.msra.mxu0 %v475
    %669 = vmatpush.bf16.msra.mxu0 %v473
    %670 = vmatmul.bf16.gmra.mxu0 %v158
    %v671 = vpop.f32.mrf.mxu0
    %v672 = vadd.f32 %v659, %v671
    %v673 = vpop.f32.mrf.mxu0
    %674 = vdwg.mxu0
    %675 = vmatpush.bf16.msra.mxu0 %v503
    %676 = vmatpush.bf16.msra.mxu0 %v501
    %677 = vmatpush.bf16.msra.mxu0 %v499
    %678 = vmatpush.bf16.msra.mxu0 %v497
    %679 = vmatpush.bf16.msra.mxu0 %v495
    %680 = vmatpush.bf16.msra.mxu0 %v493
    %681 = vmatpush.bf16.msra.mxu0 %v491
    %682 = vmatpush.bf16.msra.mxu0 %v489
    %683 = vmatmul.bf16.gmra.mxu0 %v159
    %v684 = vpop.f32.mrf.mxu0
    %v685 = vadd.f32 %v672, %v684
    %v686 = vpop.f32.mrf.mxu0
    %687 = vdwg.mxu0
    %688 = vmatpush.bf16.msra.mxu0 %v519
    %689 = vmatpush.bf16.msra.mxu0 %v517
    %690 = vmatpush.bf16.msra.mxu0 %v515
    %691 = vmatpush.bf16.msra.mxu0 %v513
    %692 = vmatpush.bf16.msra.mxu0 %v511
    %693 = vmatpush.bf16.msra.mxu0 %v509
    %694 = vmatpush.bf16.msra.mxu0 %v507
    %695 = vmatpush.bf16.msra.mxu0 %v505
    %696 = vmatmul.bf16.gmra.mxu0 %v160
    %v697 = vpop.f32.mrf.mxu0
    %v698 = vadd.f32 %v685, %v697
    %v699 = vpop.f32.mrf.mxu0
    %700 = vdwg.mxu0
    %701 = vmatpush.bf16.msra.mxu0 %v535
    %702 = vmatpush.bf16.msra.mxu0 %v533
    %703 = vmatpush.bf16.msra.mxu0 %v531
    %704 = vmatpush.bf16.msra.mxu0 %v529
    %705 = vmatpush.bf16.msra.mxu0 %v527
    %706 = vmatpush.bf16.msra.mxu0 %v525
    %707 = vmatpush.bf16.msra.mxu0 %v523
    %708 = vmatpush.bf16.msra.mxu0 %v521
    %709 = vmatmul.bf16.gmra.mxu0 %v161
    %v710 = vpop.f32.mrf.mxu0
    %v711 = vadd.f32 %v698, %v710
    %v712 = vpop.f32.mrf.mxu0
    %713 = vdwg.mxu0
    %714 = vmatpush.bf16.msra.mxu0 %v551
    %715 = vmatpush.bf16.msra.mxu0 %v549
    %716 = vmatpush.bf16.msra.mxu0 %v547
    %717 = vmatpush.bf16.msra.mxu0 %v545
    %718 = vmatpush.bf16.msra.mxu0 %v543
    %719 = vmatpush.bf16.msra.mxu0 %v541
    %720 = vmatpush.bf16.msra.mxu0 %v539
    %721 = vmatpush.bf16.msra.mxu0 %v537
    %722 = vmatmul.bf16.gmra.mxu0 %v162
    %v723 = vpop.f32.mrf.mxu0
    %v724 = vadd.f32 %v711, %v723
    %v725 = vpop.f32.mrf.mxu0
    %726 = vdwg.mxu0
    %727 = vmatpush.bf16.msra.mxu0 %v472
    %728 = vmatpush.bf16.msra.mxu0 %v470
    %729 = vmatpush.bf16.msra.mxu0 %v468
    %730 = vmatpush.bf16.msra.mxu0 %v466
    %731 = vmatpush.bf16.msra.mxu0 %v464
    %732 = vmatpush.bf16.msra.mxu0 %v462
    %733 = vmatpush.bf16.msra.mxu0 %v460
    %734 = vmatpush.bf16.msra.mxu0 %v458
    %735 = vmatmul.bf16.gmra.mxu0 %v157
    %v736 = vpop.f32.mrf.mxu0
    %v737 = vadd.f32 %v152, %v736
    %v738 = vpop.f32.mrf.mxu0
    %739 = vdwg.mxu0
    %740 = vmatpush.bf16.msra.mxu0 %v488
    %741 = vmatpush.bf16.msra.mxu0 %v486
    %742 = vmatpush.bf16.msra.mxu0 %v484
    %743 = vmatpush.bf16.msra.mxu0 %v482
    %744 = vmatpush.bf16.msra.mxu0 %v480
    %745 = vmatpush.bf16.msra.mxu0 %v478
    %746 = vmatpush.bf16.msra.mxu0 %v476
    %747 = vmatpush.bf16.msra.mxu0 %v474
    %748 = vmatmul.bf16.gmra.mxu0 %v158
    %v749 = vpop.f32.mrf.mxu0
    %v750 = vadd.f32 %v737, %v749
    %v751 = vpop.f32.mrf.mxu0
    %752 = vdwg.mxu0
    %753 = vmatpush.bf16.msra.mxu0 %v504
    %754 = vmatpush.bf16.msra.mxu0 %v502
    %755 = vmatpush.bf16.msra.mxu0 %v500
    %756 = vmatpush.bf16.msra.mxu0 %v498
    %757 = vmatpush.bf16.msra.mxu0 %v496
    %758 = vmatpush.bf16.msra.mxu0 %v494
    %759 = vmatpush.bf16.msra.mxu0 %v492
    %760 = vmatpush.bf16.msra.mxu0 %v490
    %761 = vmatmul.bf16.gmra.mxu0 %v159
    %v762 = vpop.f32.mrf.mxu0
    %v763 = vadd.f32 %v750, %v762
    %v764 = vpop.f32.mrf.mxu0
    %765 = vdwg.mxu0
    %766 = vmatpush.bf16.msra.mxu0 %v520
    %767 = vmatpush.bf16.msra.mxu0 %v518
    %768 = vmatpush.bf16.msra.mxu0 %v516
    %769 = vmatpush.bf16.msra.mxu0 %v514
    %770 = vmatpush.bf16.msra.mxu0 %v512
    %771 = vmatpush.bf16.msra.mxu0 %v510
    %772 = vmatpush.bf16.msra.mxu0 %v508
    %773 = vmatpush.bf16.msra.mxu0 %v506
    %774 = vmatmul.bf16.gmra.mxu0 %v160
    %v775 = vpop.f32.mrf.mxu0
    %v776 = vadd.f32 %v763, %v775
    %v777 = vpop.f32.mrf.mxu0
    %778 = vdwg.mxu0
    %779 = vmatpush.bf16.msra.mxu0 %v536
    %780 = vmatpush.bf16.msra.mxu0 %v534
    %781 = vmatpush.bf16.msra.mxu0 %v532
    %782 = vmatpush.bf16.msra.mxu0 %v530
    %783 = vmatpush.bf16.msra.mxu0 %v528
    %784 = vmatpush.bf16.msra.mxu0 %v526
    %785 = vmatpush.bf16.msra.mxu0 %v524
    %786 = vmatpush.bf16.msra.mxu0 %v522
    %787 = vmatmul.bf16.gmra.mxu0 %v161
    %v788 = vpop.f32.mrf.mxu0
    %v789 = vadd.f32 %v776, %v788
    %v790 = vpop.f32.mrf.mxu0
    %791 = vdwg.mxu0
    %792 = vmatpush.bf16.msra.mxu0 %v552
    %793 = vmatpush.bf16.msra.mxu0 %v550
    %794 = vmatpush.bf16.msra.mxu0 %v548
    %795 = vmatpush.bf16.msra.mxu0 %v546
    %796 = vmatpush.bf16.msra.mxu0 %v544
    %797 = vmatpush.bf16.msra.mxu0 %v542
    %798 = vmatpush.bf16.msra.mxu0 %v540
    %799 = vmatpush.bf16.msra.mxu0 %v538
    %800 = vmatmul.bf16.gmra.mxu0 %v162
    %v801 = vpop.f32.mrf.mxu0
    %v802 = vadd.f32 %v789, %v801
    %v803 = vpop.f32.mrf.mxu0
    %804 = vdwg.mxu0
    %v805 = vmax.f32 %v724, 0.0
    %v806 = vmax.f32 %v802, 0.0
    %v807 = vld [vmem:[%s3] sm:$0x3]
    %v809 = vperm.slane %v807, 0
    %v810 = vperm.slane %v807, 1
    %v813 = vmul.f32 %v805, %v809
    %v814 = vmul.f32 %v806, %v810
    %vm815 = vcmask 1041408
    %v816 = vsel %vm815, %v813, 0.0
    %v817 = vsel %vm815, %v814, 0.0
    %v818 = vadd.f32 %v816, %v817
    %819 = vadd.xlane.f32.xlu0 %v818
    %v820 = vpop.xlane.xlu0 %819
    %v821 = vld [vmem:[#allocation2] sm:$0x1]
    %v823 = vperm.slane %v821, 0
    %v825 = vadd.f32 %v820, %v823
    %v826 = vxor.u32 %v825, 2147483648
    %v827 = vmul.f32 %v826, 1.442695
    %v828 = vpow.pop %v827
    %v829 = vadd.f32 %v828, 1.0
    %v830 = vrcp.pop %v829
    %v831 = vmul.f32 %v829, %v830
    %v832 = vsub.f32 1.0, %v831
    %v833 = vmul.f32 %v830, %v832
    %v834 = vadd.f32 %v830, %v833
    %vm835 = vweird.f32 %v829
    %vm836 = vweird.f32 %v830
    %vm837 = vmor %vm835, %vm836
    %v838 = vsel %vm837, %v830, %v834
    %v839 = vand.u32 2147483647, %v829
    %vm840 = vcmp.eq.f32.partialorder %v839, 8.507059e+37
    %v841 = vand.u32 %v829, 2147483648
    %v842 = vor.u32 1.1754944e-38, %v841
    %v843 = vsel %vm840, %v842, %v838
    %v844 = vmul.f32 1.0, %v843
    %vm845 = vcmask 1024
    %846 = vst.msk [vmem:[%s5] sm:$0x3] %vm845, %v844
    // Predicated region
    $region30: #{tpu_custom_call.1} parent=1 // pred_check
      _
    $region31: #{tpu_custom_call.1} parent=1 // pred_check_branch
      %848 = sbr.rel (0) target = $region33
    $region32: #{tpu_custom_call.1} parent=1 // pred_region
      _
    $region33: #{tpu_custom_call.1} parent=1 // pred_fallthru
      _
    // Predicated region
    $region34: #{tpu_custom_call.1} parent=1 // pred_check
      _
    $region35: #{tpu_custom_call.1} parent=1 // pred_check_branch
      %850 = sbr.rel (0) target = $region37
    $region36: #{tpu_custom_call.1} parent=1 // pred_region
      _
    $region37: #{tpu_custom_call.1} parent=1 // pred_fallthru
      _
    %851 = vsyncpa [#allocation4], 1
    %852 = vsyncpa [#allocation6], 1

</llo_original>
